<compile_context>
chip_gen: v5e
topology: v5e:2x2
jax: 0.10.0
libtpu: 0.0.40
codegen_flags: <defaults>
</compile_context>

<pallas_src>
import jax
import jax.numpy as jnp
from jax.experimental import pallas as pl
from jax.experimental.pallas import tpu as pltpu


def _round_up(n, m):
    return ((n + m - 1) // m) * m


def _make_kernel(d_model, d_pad, f_pad):
    inv_d = 1.0 / float(d_model)
    eps = 1e-5

    def kernel(x_ref, w13_ref, w2t_ref, aux_ref, o_ref):
        x = x_ref[...]                                        # (tm, Dp) bf16

        # Packed small operands (f32): row 0 = [b1 | b3], 1 = b2, 2 = gamma, 3 = beta.
        b13 = aux_ref[0:1, :]                                 # (1, Fp+Dp)
        b2 = aux_ref[1:2, :d_pad]                             # (1, Dp)
        gamma = aux_ref[2:3, :d_pad]
        beta = aux_ref[3:4, :d_pad]

        # conv1 and conv3 fused: one bf16 MXU matmul against the concatenated,
        # pre-transposed weight (shared LHS x); accumulate in f32.
        hr = jnp.dot(x, w13_ref[...],
                     preferred_element_type=jnp.float32) + b13   # (tm, Fp+Dp) f32
        h = jnp.maximum(hr[:, :f_pad], 0.0)                   # conv1 + ReLU -> (tm, Fp)
        r = hr[:, f_pad:]                                     # conv3 residual -> (tm, Dp)
        # TODO(synk): nn.Dropout is identity in eval mode; training-mode dropout not implemented.

        # conv2 (1x1): F -> D, bf16 on the MXU, f32 accumulation.
        y = jnp.dot(h.astype(jnp.bfloat16), w2t_ref[...],
                    preferred_element_type=jnp.float32) + b2     # (tm, Dp) f32

        z = r + y                                             # padded lanes are exactly 0

        # LayerNorm over the true d_model lanes.  Padded z lanes are exactly 0,
        # so sum(z) / sum(z*z) need no lane mask; use E[z^2] - mean^2.
        mean = jnp.sum(z, axis=-1, keepdims=True) * inv_d
        mean_sq = jnp.sum(z * z, axis=-1, keepdims=True) * inv_d
        var = jnp.maximum(mean_sq - mean * mean, 0.0)
        zn = (z - mean) * jax.lax.rsqrt(var + eps)
        # gamma/beta padded lanes are zero -> padded output lanes are zero.
        o_ref[...] = (zn * gamma + beta).astype(o_ref.dtype)

    return kernel


def resnet_block_type1(x, params, *, tm=1024, x_buffers=2):
    """x: (B, L, d_model) float32. Returns (B, L, d_model)."""
    B, L, D = x.shape
    F_ = params["w1"].shape[0]
    N = B * L

    # Lane-dense padded widths (multiples of 128).
    Dp = _round_up(D, 128)
    Fp = _round_up(F_, 128)
    Wtot = Fp + Dp

    # --- row tile: as large as useful, but keep >= 2 grid steps for megacore ---
    tm_eff = min(_round_up(tm, 8), _round_up(N, 8))
    if _round_up(N, 8) >= 16:
        tm_eff = min(tm_eff, _round_up(pl.cdiv(N, 2), 8))
    tm_eff = max(tm_eff, 8)

    # --- generation-aware VMEM budget (never claim all of v7x's 64 MiB) ---
    try:
        vmem_cap = int(pltpu.get_tpu_info().vmem_capacity_bytes)
    except Exception:
        vmem_cap = 64 << 20                        # assume the smallest (v7x) if unknown
    budget = min((vmem_cap * 3) // 4, 96 << 20)

    def vmem_estimate(t):
        resident = (Dp * Wtot + Fp * Dp) * 2 + 8 * Wtot * 4         # bf16 weights + f32 aux (1-buf)
        streamed = x_buffers * t * Dp * 2 + 2 * t * Dp * 4          # x in (bf16) + out (f32)
        interm = t * Wtot * 4 + t * Fp * 2 + 4 * t * Dp * 4         # hr + h(bf16) + y/z/zn/...
        return int(1.25 * (resident + streamed + interm))

    while vmem_estimate(tm_eff) > budget and tm_eff > 64:
        tm_eff = max(_round_up(tm_eff // 2, 8), 64)
    vmem_limit = min(budget, max(vmem_estimate(tm_eff), 32 << 20))

    grid_m = pl.cdiv(N, tm_eff)                    # partial tail block; no row padding

    # --- host-side layout plumbing (bf16 operands; lane pad only if needed) ---
    x2 = x.reshape(N, D)
    if D == Dp:
        x2 = x2.astype(jnp.bfloat16)               # no pad / no output slice
    else:
        x2 = jnp.zeros((N, Dp), jnp.bfloat16).at[:, :D].set(x2.astype(jnp.bfloat16))

    # Fused, pre-transposed conv1|conv3 weight: (Dp, Fp+Dp); padded entries zero.
    w13 = jnp.zeros((Dp, Wtot), jnp.float32)
    w13 = w13.at[:D, :F_].set(params["w1"].T)              # conv1: (F,D) -> (D,F)
    w13 = w13.at[:D, Fp:Fp + D].set(params["w3"].T)        # conv3: (D,D) -> (D,D)
    w13 = w13.astype(jnp.bfloat16)
    w2t = (jnp.zeros((Fp, Dp), jnp.float32)
           .at[:F_, :D].set(params["w2"].T).astype(jnp.bfloat16))

    # Pack all tiny (1, width) operands into one f32 block.
    aux = jnp.zeros((4, Wtot), jnp.float32)
    aux = aux.at[0, :F_].set(params["b1"][0])
    aux = aux.at[0, Fp:Fp + D].set(params["b3"][0])
    aux = aux.at[1, :D].set(params["b2"][0])
    aux = aux.at[2, :D].set(params["gamma"][0])
    aux = aux.at[3, :D].set(params["beta"][0])

    kernel = _make_kernel(D, Dp, Fp)

    def build(single_buffer_weights):
        def const_spec(shape):
            if single_buffer_weights:
                return pl.BlockSpec(shape, lambda i: (0, 0),
                                    pipeline_mode=pl.Buffered(1))
            return pl.BlockSpec(shape, lambda i: (0, 0))

        if x_buffers != 2:
            x_spec = pl.BlockSpec((tm_eff, Dp), lambda i: (i, 0),
                                  pipeline_mode=pl.Buffered(x_buffers))
        else:
            x_spec = pl.BlockSpec((tm_eff, Dp), lambda i: (i, 0))

        return pl.pallas_call(
            kernel,
            out_shape=jax.ShapeDtypeStruct((N, Dp), x.dtype),
            grid_spec=pltpu.PrefetchScalarGridSpec(
                num_scalar_prefetch=0,
                grid=(grid_m,),
                in_specs=[
                    x_spec,                         # x rows (streamed)
                    const_spec((Dp, Wtot)),         # fused conv1|conv3 weight (resident)
                    const_spec((Fp, Dp)),           # conv2 weight (pre-T, resident)
                    const_spec((4, Wtot)),          # packed b1|b3, b2, gamma, beta
                ],
                out_specs=pl.BlockSpec((tm_eff, Dp), lambda i: (i, 0)),
            ),
            compiler_params=pltpu.CompilerParams(
                dimension_semantics=("parallel",),  # shard row tiles across TCs
                vmem_limit_bytes=vmem_limit,
            ),
        )

    try:
        out2 = build(True)(x2, w13, w2t, aux)
    except Exception:
        # Fallback if single-buffered (Buffered(1)) constant blocks are rejected.
        out2 = build(False)(x2, w13, w2t, aux)

    if D != Dp:
        out2 = out2[:, :D]
    return out2.reshape(B, L, D)


def init_params(key, d_model, d_ff):
    ks = jax.random.split(key, 6)
    scale1 = 1.0 / jnp.sqrt(d_model)
    scale2 = 1.0 / jnp.sqrt(d_ff)
    return {
        # Conv1d weights (out_ch, in_ch, 1) with kernel dim squeezed -> (out, in)
        "w1": jax.random.uniform(ks[0], (d_ff, d_model), jnp.float32, -scale1, scale1),
        "b1": jax.random.uniform(ks[1], (1, d_ff), jnp.float32, -scale1, scale1),
        "w2": jax.random.uniform(ks[2], (d_model, d_ff), jnp.float32, -scale2, scale2),
        "b2": jax.random.uniform(ks[3], (1, d_model), jnp.float32, -scale2, scale2),
        "w3": jax.random.uniform(ks[4], (d_model, d_model), jnp.float32, -scale1, scale1),
        "b3": jax.random.uniform(ks[5], (1, d_model), jnp.float32, -scale1, scale1),
        # LayerNorm affine params (PyTorch default init: ones / zeros)
        "gamma": jnp.ones((1, d_model), jnp.float32),
        "beta": jnp.zeros((1, d_model), jnp.float32),
    }


def _reference(x, p):
    # Pure-JAX f32 reference of the PyTorch forward (eval mode).
    h = jnp.maximum(jnp.einsum("bld,fd->blf", x, p["w1"]) + p["b1"][0], 0.0)
    y = jnp.einsum("blf,df->bld", h, p["w2"]) + p["b2"][0]
    r = jnp.einsum("bld,ed->ble", x, p["w3"]) + p["b3"][0]
    z = r + y
    mean = jnp.mean(z, axis=-1, keepdims=True)
    var = jnp.mean((z - mean) ** 2, axis=-1, keepdims=True)
    return (z - mean) / jnp.sqrt(var + 1e-5) * p["gamma"][0] + p["beta"][0]


if __name__ == "__main__":
    B, L, d_model, d_ff = 2, 16, 32, 64
    key = jax.random.PRNGKey(0)
    kx, kp = jax.random.split(key)
    x = jax.random.normal(kx, (B, L, d_model), jnp.float32)
    params = init_params(kp, d_model, d_ff)

    out = resnet_block_type1(x, params)
    out = jax.block_until_ready(out)

    ref = _reference(x, params)
    assert out.shape == (B, L, d_model)
    # bf16 MXU operands -> relaxed tolerance vs the f32 reference.
    assert jnp.allclose(out, ref, atol=5e-2, rtol=5e-2), "mismatch vs reference"
    print("KERNEL_OK")
</pallas_src>

<mosaic_0001>
module attributes {stable_mosaic.version = 11 : i64} {
  func.func @kernel(%arg0: i32, %arg1: memref<16x128xbf16, #tpu.memory_space<vmem>>, %arg2: memref<128x256xbf16, #tpu.memory_space<vmem>>, %arg3: memref<128x128xbf16, #tpu.memory_space<vmem>>, %arg4: memref<4x256xf32, #tpu.memory_space<vmem>>, %arg5: memref<16x128xf32, #tpu.memory_space<vmem>>) attributes {dimension_semantics = [#tpu.dimension_semantics<parallel>], iteration_bounds = array<i64: 2>, scalar_prefetch = 0 : i64, scratch_operands = 0 : i64, tpu.core_type = #tpu.core_type<tc>, window_params = [{transform_indices = @transform_0, window_bounds = array<i64: 16, 128>}, {pipeline_mode = #tpu.pipeline_mode<synchronous>, transform_indices = @transform_1, window_bounds = array<i64: 128, 256>}, {pipeline_mode = #tpu.pipeline_mode<synchronous>, transform_indices = @transform_2, window_bounds = array<i64: 128, 128>}, {pipeline_mode = #tpu.pipeline_mode<synchronous>, transform_indices = @transform_3, window_bounds = array<i64: 4, 256>}, {transform_indices = @transform_4, window_bounds = array<i64: 16, 128>}]} {
    %c0 = arith.constant 0 : index
    %c0_0 = arith.constant 0 : index
    %0 = vector.load %arg1[%c0, %c0_0] : memref<16x128xbf16, #tpu.memory_space<vmem>>, vector<16x128xbf16>
    %c0_1 = arith.constant 0 : index
    %c0_2 = arith.constant 0 : index
    %1 = vector.load %arg4[%c0_1, %c0_2] : memref<4x256xf32, #tpu.memory_space<vmem>>, vector<1x256xf32>
    %c1 = arith.constant 1 : index
    %c0_3 = arith.constant 0 : index
    %2 = vector.load %arg4[%c1, %c0_3] : memref<4x256xf32, #tpu.memory_space<vmem>>, vector<1x128xf32>
    %c2 = arith.constant 2 : index
    %c0_4 = arith.constant 0 : index
    %3 = vector.load %arg4[%c2, %c0_4] : memref<4x256xf32, #tpu.memory_space<vmem>>, vector<1x128xf32>
    %c3 = arith.constant 3 : index
    %c0_5 = arith.constant 0 : index
    %4 = vector.load %arg4[%c3, %c0_5] : memref<4x256xf32, #tpu.memory_space<vmem>>, vector<1x128xf32>
    %c0_6 = arith.constant 0 : index
    %c0_7 = arith.constant 0 : index
    %5 = vector.load %arg2[%c0_6, %c0_7] : memref<128x256xbf16, #tpu.memory_space<vmem>>, vector<128x256xbf16>
    %cst = arith.constant dense<0.000000e+00> : vector<16x256xf32>
    %6 = tpu.matmul %0, %5, %cst {dimension_numbers = #tpu.dot_dimension_numbers<[1], [0], [0], [1], [0, 0, 1, 1], [], []>} : vector<16x128xbf16>, vector<128x256xbf16>, vector<16x256xf32> -> vector<16x256xf32>
    %7 = vector.broadcast %1 : vector<1x256xf32> to vector<16x256xf32>
    %8 = arith.addf %6, %7 : vector<16x256xf32>
    %9 = vector.extract_strided_slice %8 {offsets = [0, 0], sizes = [16, 128], strides = [1, 1]} : vector<16x256xf32> to vector<16x128xf32>
    %cst_8 = arith.constant 0.000000e+00 : f32
    %10 = vector.broadcast %cst_8 : f32 to vector<16x128xf32>
    %11 = arith.maximumf %9, %10 : vector<16x128xf32>
    %12 = vector.extract_strided_slice %8 {offsets = [0, 128], sizes = [16, 128], strides = [1, 1]} : vector<16x256xf32> to vector<16x128xf32>
    %13 = arith.truncf %11 : vector<16x128xf32> to vector<16x128xbf16>
    %c0_9 = arith.constant 0 : index
    %c0_10 = arith.constant 0 : index
    %14 = vector.load %arg3[%c0_9, %c0_10] : memref<128x128xbf16, #tpu.memory_space<vmem>>, vector<128x128xbf16>
    %cst_11 = arith.constant dense<0.000000e+00> : vector<16x128xf32>
    %15 = tpu.matmul %13, %14, %cst_11 {dimension_numbers = #tpu.dot_dimension_numbers<[1], [0], [0], [1], [0, 0, 1, 1], [], []>} : vector<16x128xbf16>, vector<128x128xbf16>, vector<16x128xf32> -> vector<16x128xf32>
    %16 = vector.broadcast %2 : vector<1x128xf32> to vector<16x128xf32>
    %17 = arith.addf %15, %16 : vector<16x128xf32>
    %18 = arith.addf %12, %17 : vector<16x128xf32>
    %cst_12 = arith.constant dense<0.000000e+00> : vector<16xf32>
    %19 = vector.multi_reduction <add>, %18, %cst_12 [1] : vector<16x128xf32> to vector<16xf32>
    %20 = vector.shape_cast %19 : vector<16xf32> to vector<16x1xf32>
    %cst_13 = arith.constant 3.125000e-02 : f32
    %21 = vector.broadcast %cst_13 : f32 to vector<16x1xf32>
    %22 = arith.mulf %20, %21 : vector<16x1xf32>
    %23 = arith.mulf %18, %18 : vector<16x128xf32>
    %cst_14 = arith.constant dense<0.000000e+00> : vector<16xf32>
    %24 = vector.multi_reduction <add>, %23, %cst_14 [1] : vector<16x128xf32> to vector<16xf32>
    %25 = vector.shape_cast %24 : vector<16xf32> to vector<16x1xf32>
    %cst_15 = arith.constant 3.125000e-02 : f32
    %26 = vector.broadcast %cst_15 : f32 to vector<16x1xf32>
    %27 = arith.mulf %25, %26 : vector<16x1xf32>
    %28 = arith.mulf %22, %22 : vector<16x1xf32>
    %29 = arith.subf %27, %28 : vector<16x1xf32>
    %cst_16 = arith.constant 0.000000e+00 : f32
    %30 = vector.broadcast %cst_16 : f32 to vector<16x1xf32>
    %31 = arith.maximumf %29, %30 : vector<16x1xf32>
    %32 = vector.broadcast %22 : vector<16x1xf32> to vector<16x128xf32>
    %33 = arith.subf %18, %32 : vector<16x128xf32>
    %cst_17 = arith.constant 9.99999974E-6 : f32
    %34 = vector.broadcast %cst_17 : f32 to vector<16x1xf32>
    %35 = arith.addf %31, %34 : vector<16x1xf32>
    %36 = math.rsqrt %35 : vector<16x1xf32>
    %37 = vector.broadcast %36 : vector<16x1xf32> to vector<16x128xf32>
    %38 = arith.mulf %33, %37 : vector<16x128xf32>
    %39 = vector.broadcast %3 : vector<1x128xf32> to vector<16x128xf32>
    %40 = arith.mulf %38, %39 : vector<16x128xf32>
    %41 = vector.broadcast %4 : vector<1x128xf32> to vector<16x128xf32>
    %42 = arith.addf %40, %41 : vector<16x128xf32>
    %c0_18 = arith.constant 0 : index
    %c0_19 = arith.constant 0 : index
    %43 = vector.load %arg5[%c0_18, %c0_19] : memref<16x128xf32, #tpu.memory_space<vmem>>, vector<16x128xf32>
    tpu.vector_store %arg5[%c0_18, %c0_19], %42 {strides = array<i32>} : memref<16x128xf32, #tpu.memory_space<vmem>>, vector<16x128xf32>,
    return
  }
  func.func @transform_0(%arg0: i32) -> (i32, i32) {
    %c0_i32 = arith.constant 0 : i32
    %c0_i32_0 = arith.constant 0 : i32
    return %arg0, %c0_i32 : i32, i32
  }
  func.func @transform_1(%arg0: i32) -> (i32, i32) {
    %c0_i32 = arith.constant 0 : i32
    %c0_i32_0 = arith.constant 0 : i32
    %c0_i32_1 = arith.constant 0 : i32
    return %c0_i32, %c0_i32_0 : i32, i32
  }
  func.func @transform_2(%arg0: i32) -> (i32, i32) {
    %c0_i32 = arith.constant 0 : i32
    %c0_i32_0 = arith.constant 0 : i32
    %c0_i32_1 = arith.constant 0 : i32
    return %c0_i32, %c0_i32_0 : i32, i32
  }
  func.func @transform_3(%arg0: i32) -> (i32, i32) {
    %c0_i32 = arith.constant 0 : i32
    %c0_i32_0 = arith.constant 0 : i32
    %c0_i32_1 = arith.constant 0 : i32
    return %c0_i32, %c0_i32_0 : i32, i32
  }
  func.func @transform_4(%arg0: i32) -> (i32, i32) {
    %c0_i32 = arith.constant 0 : i32
    %c0_i32_0 = arith.constant 0 : i32
    return %arg0, %c0_i32 : i32, i32
  }
}

module attributes {stable_mosaic.version = 11 : i64} {
  func.func @kernel(%arg0: i32, %arg1: memref<16x128xbf16, #tpu.memory_space<vmem>>, %arg2: memref<128x256xbf16, #tpu.memory_space<vmem>>, %arg3: memref<128x128xbf16, #tpu.memory_space<vmem>>, %arg4: memref<4x256xf32, #tpu.memory_space<vmem>>, %arg5: memref<16x128xf32, #tpu.memory_space<vmem>>) attributes {dimension_semantics = [#tpu.dimension_semantics<parallel>], iteration_bounds = array<i64: 2>, scalar_prefetch = 0 : i64, scratch_operands = 0 : i64, tpu.core_type = #tpu.core_type<tc>, window_params = [{transform_indices = @transform_0, window_bounds = array<i64: 16, 128>}, {pipeline_mode = #tpu.pipeline_mode<synchronous>, transform_indices = @transform_1, window_bounds = array<i64: 128, 256>}, {pipeline_mode = #tpu.pipeline_mode<synchronous>, transform_indices = @transform_2, window_bounds = array<i64: 128, 128>}, {pipeline_mode = #tpu.pipeline_mode<synchronous>, transform_indices = @transform_3, window_bounds = array<i64: 4, 256>}, {transform_indices = @transform_4, window_bounds = array<i64: 16, 128>}]} {
    %c0 = arith.constant 0 : index
    %c0_0 = arith.constant 0 : index
    %0 = vector.load %arg1[%c0, %c0_0] : memref<16x128xbf16, #tpu.memory_space<vmem>>, vector<16x128xbf16>
    %c0_1 = arith.constant 0 : index
    %c0_2 = arith.constant 0 : index
    %1 = vector.load %arg4[%c0_1, %c0_2] : memref<4x256xf32, #tpu.memory_space<vmem>>, vector<1x256xf32>
    %c1 = arith.constant 1 : index
    %c0_3 = arith.constant 0 : index
    %2 = vector.load %arg4[%c1, %c0_3] : memref<4x256xf32, #tpu.memory_space<vmem>>, vector<1x128xf32>
    %c2 = arith.constant 2 : index
    %c0_4 = arith.constant 0 : index
    %3 = vector.load %arg4[%c2, %c0_4] : memref<4x256xf32, #tpu.memory_space<vmem>>, vector<1x128xf32>
    %c3 = arith.constant 3 : index
    %c0_5 = arith.constant 0 : index
    %4 = vector.load %arg4[%c3, %c0_5] : memref<4x256xf32, #tpu.memory_space<vmem>>, vector<1x128xf32>
    %c0_6 = arith.constant 0 : index
    %c0_7 = arith.constant 0 : index
    %5 = vector.load %arg2[%c0_6, %c0_7] : memref<128x256xbf16, #tpu.memory_space<vmem>>, vector<128x256xbf16>
    %cst = arith.constant dense<0.000000e+00> : vector<16x256xf32>
    %6 = tpu.matmul %0, %5, %cst {dimension_numbers = #tpu.dot_dimension_numbers<[1], [0], [0], [1], [0, 0, 1, 1], [], []>} : vector<16x128xbf16>, vector<128x256xbf16>, vector<16x256xf32> -> vector<16x256xf32>
    %7 = vector.broadcast %1 : vector<1x256xf32> to vector<16x256xf32>
    %8 = arith.addf %6, %7 : vector<16x256xf32>
    %9 = vector.extract_strided_slice %8 {offsets = [0, 0], sizes = [16, 128], strides = [1, 1]} : vector<16x256xf32> to vector<16x128xf32>
    %cst_8 = arith.constant 0.000000e+00 : f32
    %10 = vector.broadcast %cst_8 : f32 to vector<16x128xf32>
    %11 = arith.maximumf %9, %10 : vector<16x128xf32>
    %12 = vector.extract_strided_slice %8 {offsets = [0, 128], sizes = [16, 128], strides = [1, 1]} : vector<16x256xf32> to vector<16x128xf32>
    %13 = arith.truncf %11 : vector<16x128xf32> to vector<16x128xbf16>
    %c0_9 = arith.constant 0 : index
    %c0_10 = arith.constant 0 : index
    %14 = vector.load %arg3[%c0_9, %c0_10] : memref<128x128xbf16, #tpu.memory_space<vmem>>, vector<128x128xbf16>
    %cst_11 = arith.constant dense<0.000000e+00> : vector<16x128xf32>
    %15 = tpu.matmul %13, %14, %cst_11 {dimension_numbers = #tpu.dot_dimension_numbers<[1], [0], [0], [1], [0, 0, 1, 1], [], []>} : vector<16x128xbf16>, vector<128x128xbf16>, vector<16x128xf32> -> vector<16x128xf32>
    %16 = vector.broadcast %2 : vector<1x128xf32> to vector<16x128xf32>
    %17 = arith.addf %15, %16 : vector<16x128xf32>
    %18 = arith.addf %12, %17 : vector<16x128xf32>
    %cst_12 = arith.constant dense<0.000000e+00> : vector<16xf32>
    %19 = vector.multi_reduction <add>, %18, %cst_12 [1] : vector<16x128xf32> to vector<16xf32>
    %20 = vector.shape_cast %19 : vector<16xf32> to vector<16x1xf32>
    %cst_13 = arith.constant 3.125000e-02 : f32
    %21 = vector.broadcast %cst_13 : f32 to vector<16x1xf32>
    %22 = arith.mulf %20, %21 : vector<16x1xf32>
    %23 = arith.mulf %18, %18 : vector<16x128xf32>
    %cst_14 = arith.constant dense<0.000000e+00> : vector<16xf32>
    %24 = vector.multi_reduction <add>, %23, %cst_14 [1] : vector<16x128xf32> to vector<16xf32>
    %25 = vector.shape_cast %24 : vector<16xf32> to vector<16x1xf32>
    %cst_15 = arith.constant 3.125000e-02 : f32
    %26 = vector.broadcast %cst_15 : f32 to vector<16x1xf32>
    %27 = arith.mulf %25, %26 : vector<16x1xf32>
    %28 = arith.mulf %22, %22 : vector<16x1xf32>
    %29 = arith.subf %27, %28 : vector<16x1xf32>
    %cst_16 = arith.constant 0.000000e+00 : f32
    %30 = vector.broadcast %cst_16 : f32 to vector<16x1xf32>
    %31 = arith.maximumf %29, %30 : vector<16x1xf32>
    %32 = vector.broadcast %22 : vector<16x1xf32> to vector<16x128xf32>
    %33 = arith.subf %18, %32 : vector<16x128xf32>
    %cst_17 = arith.constant 9.99999974E-6 : f32
    %34 = vector.broadcast %cst_17 : f32 to vector<16x1xf32>
    %35 = arith.addf %31, %34 : vector<16x1xf32>
    %36 = math.rsqrt %35 : vector<16x1xf32>
    %37 = vector.broadcast %36 : vector<16x1xf32> to vector<16x128xf32>
    %38 = arith.mulf %33, %37 : vector<16x128xf32>
    %39 = vector.broadcast %3 : vector<1x128xf32> to vector<16x128xf32>
    %40 = arith.mulf %38, %39 : vector<16x128xf32>
    %41 = vector.broadcast %4 : vector<1x128xf32> to vector<16x128xf32>
    %42 = arith.addf %40, %41 : vector<16x128xf32>
    %c0_18 = arith.constant 0 : index
    %c0_19 = arith.constant 0 : index
    %43 = vector.load %arg5[%c0_18, %c0_19] : memref<16x128xf32, #tpu.memory_space<vmem>>, vector<16x128xf32>
    tpu.vector_store %arg5[%c0_18, %c0_19], %42 {strides = array<i32>} : memref<16x128xf32, #tpu.memory_space<vmem>>, vector<16x128xf32>,
    return
  }
  func.func @transform_0(%arg0: i32) -> (i32, i32) {
    %c0_i32 = arith.constant 0 : i32
    %c0_i32_0 = arith.constant 0 : i32
    return %arg0, %c0_i32 : i32, i32
  }
  func.func @transform_1(%arg0: i32) -> (i32, i32) {
    %c0_i32 = arith.constant 0 : i32
    %c0_i32_0 = arith.constant 0 : i32
    %c0_i32_1 = arith.constant 0 : i32
    return %c0_i32, %c0_i32_0 : i32, i32
  }
  func.func @transform_2(%arg0: i32) -> (i32, i32) {
    %c0_i32 = arith.constant 0 : i32
    %c0_i32_0 = arith.constant 0 : i32
    %c0_i32_1 = arith.constant 0 : i32
    return %c0_i32, %c0_i32_0 : i32, i32
  }
  func.func @transform_3(%arg0: i32) -> (i32, i32) {
    %c0_i32 = arith.constant 0 : i32
    %c0_i32_0 = arith.constant 0 : i32
    %c0_i32_1 = arith.constant 0 : i32
    return %c0_i32, %c0_i32_0 : i32, i32
  }
  func.func @transform_4(%arg0: i32) -> (i32, i32) {
    %c0_i32 = arith.constant 0 : i32
    %c0_i32_0 = arith.constant 0 : i32
    return %arg0, %c0_i32 : i32, i32
  }
}

</mosaic_0001>

<llo_original>
// kernel: tpu_custom_call.1
$region0: #{tpu_custom_call.1}
  #allocation0 [shape = 'u32[]', space=smem, size = 0x4, offset = 0x4, fixed_abs, tag = 'smem constant byte address 0x4 - core index']
  #allocation1 [shape = 'u32[72,128]{1,0:T(1,128)}', space=vmem, size = 0x9000, scoped, tag = 'internal scratch']
  %s0 = inlined_call_operand.hbm [shape: bf16[32,128], index: 0, kind: input, shape index: {}]
  %s1 = inlined_call_operand.hbm [shape: bf16[128,256], index: 1, kind: input, shape index: {}]
  %s2 = inlined_call_operand.hbm [shape: bf16[128,128], index: 2, kind: input, shape index: {}]
  %s3 = inlined_call_operand.hbm [shape: f32[4,256], index: 3, kind: input, shape index: {}]
  %s4 = inlined_call_operand.hbm [shape: f32[32,128], index: 4, kind: output, shape index: {}]
  %s5 = sld [smem:[#allocation0]]
  $region65: #{tpu_custom_call.1} parent=0
    _
  %s7 = ssub.s32 1, %s5
  %s8 = scalar_select 0, %s7, %s5
  $region1: #{tpu_custom_call.1} parent=0
    #allocation2 [shape = 'u8[8192]{0}', space=vmem, size = 0x2000, scoped, tag = 'input window, operand 0']
    #allocation3 [shape = 's32[2]{0}', space=sflag, size = 0x8, scoped, tag = 'scoped memory for tpu_custom_call.1']
    #allocation4 [shape = 's32[2]{0}', space=sflag, size = 0x8, scoped, tag = 'scoped memory for tpu_custom_call.1']
    #allocation5 [shape = 'u8[65536]{0}', space=vmem, size = 0x10000, scoped, tag = 'input window, operand 1, single buffered']
    #allocation6 [shape = 's32[1]{0}', space=sflag, size = 0x4, scoped, tag = 'scoped memory for tpu_custom_call.1']
    #allocation7 [shape = 'u8[32768]{0}', space=vmem, size = 0x8000, scoped, tag = 'input window, operand 2, single buffered']
    #allocation8 [shape = 'u8[4096]{0}', space=vmem, size = 0x1000, scoped, tag = 'input window, operand 3, single buffered']
    #allocation9 [shape = 's32[1]{0}', space=sflag, size = 0x4, scoped, tag = 'scoped memory for tpu_custom_call.1']
    #allocation10 [shape = 'u8[16384]{0}', space=vmem, size = 0x4000, scoped, tag = 'output window, operand 0']
    %9 = vsyncpa [#allocation3], 0
    %s10 = scalar_lea.sflag [#allocation3], 1
    %11 = vsyncpa %s10, 0
    %12 = vsyncpa [#allocation6], 0
    %13 = vsyncpa [#allocation9], 0
    %14 = vsyncpa [#allocation4], 0
    %s15 = scalar_lea.sflag [#allocation4], 1
    %16 = vsyncpa %s15, 0
    loop: start=0, step=1, limit=4
    $region2: #{tpu_custom_call.1} parent=1 // loop_pre_header
      _
    $region3: #{tpu_custom_call.1} parent=1 // loop_header
      %s18 = sphi 0, %s22
      %p19 = scmp.ge.s32.totalorder %s18, 4
      %s28 = sphi 0, %s30
      %s31 = sphi 0, %s28
      %s32 = sphi 0, %s31
      %s48 = sphi 0, %s32
      %s52 = sphi 0, %s52
      %s54 = sphi 0, %s52
      %s55 = sphi 0, %s54
      %s69 = sphi 0, %s55
      %s73 = sphi 0, %s73
      %s75 = sphi 0, %s73
      %s76 = sphi 0, %s75
      %s90 = sphi 0, %s76
      %s94 = sphi 0, %s94
      %s96 = sphi 0, %s94
      %s97 = sphi 0, %s96
      %s111 = sphi 0, %s97
      %s117 = sphi 0, %s119
      %s120 = sphi 0, %s117
      %s121 = sphi 0, %s120
      %s137 = sphi 0, %s121
    $region4: #{tpu_custom_call.1} parent=1 // loop_header_branch
      %21 = sbr.rel (%p19) target = $region8
    $region5: #{tpu_custom_call.1} parent=1 // loop_body
      %s23 = ssub.s32 %s18, 1
      %s24 = ssub.s32 %s18, 2
      %s25 = sadd.s32 %s18, 1
      %s26 = ssub.s32 %s18, %s25
      %p27 = scmp.eq.s32.totalorder %s26, 0
      %s29 = sadd.s32 %s28, 1
      %s30 = scalar_select %p27, %s28, %s29
      %p33 = pneg %p27
      %p34 = scmp.eq.s32.totalorder %s18, 1
      %p35 = por %p33, %p34
      %p36 = scmp.ne.s32.totalorder %s28, %s31
      %p37 = scmp.eq.s32.totalorder %s18, 0
      %p38 = por %p36, %p37
      %p39 = scmp.ne.s32.totalorder %s28, %s31
      %p40 = scmp.eq.s32.totalorder %s23, 1
      %p41 = por %p39, %p40
      %p42 = scmp.ne.s32.totalorder %s31, %s32
      %p43 = scmp.eq.s32.totalorder %s23, 0
      %p44 = por %p42, %p43
      %p45 = scmp.ne.s32.totalorder %s31, %s32
      %p46 = scmp.eq.s32.totalorder %s24, 1
      %p47 = por %p45, %p46
      %p49 = scmp.ne.s32.totalorder %s32, %s48
      %p50 = scmp.eq.s32.totalorder %s24, 0
      %p51 = por %p49, %p50
      %s53 = sadd.s32 %s52, 1
      %p56 = scmp.eq.s32.totalorder %s18, 1
      %p57 = scmp.ne.s32.totalorder %s52, %s54
      %p58 = scmp.eq.s32.totalorder %s18, 0
      %p59 = por %p57, %p58
      %p60 = scmp.ne.s32.totalorder %s52, %s54
      %p61 = scmp.eq.s32.totalorder %s23, 1
      %p62 = por %p60, %p61
      %p63 = scmp.ne.s32.totalorder %s54, %s55
      %p64 = scmp.eq.s32.totalorder %s23, 0
      %p65 = por %p63, %p64
      %p66 = scmp.ne.s32.totalorder %s54, %s55
      %p67 = scmp.eq.s32.totalorder %s24, 1
      %p68 = por %p66, %p67
      %p70 = scmp.ne.s32.totalorder %s55, %s69
      %p71 = scmp.eq.s32.totalorder %s24, 0
      %p72 = por %p70, %p71
      %s74 = sadd.s32 %s73, 1
      %p77 = scmp.eq.s32.totalorder %s18, 1
      %p78 = scmp.ne.s32.totalorder %s73, %s75
      %p79 = scmp.eq.s32.totalorder %s18, 0
      %p80 = por %p78, %p79
      %p81 = scmp.ne.s32.totalorder %s73, %s75
      %p82 = scmp.eq.s32.totalorder %s23, 1
      %p83 = por %p81, %p82
      %p84 = scmp.ne.s32.totalorder %s75, %s76
      %p85 = scmp.eq.s32.totalorder %s23, 0
      %p86 = por %p84, %p85
      %p87 = scmp.ne.s32.totalorder %s75, %s76
      %p88 = scmp.eq.s32.totalorder %s24, 1
      %p89 = por %p87, %p88
      %p91 = scmp.ne.s32.totalorder %s76, %s90
      %p92 = scmp.eq.s32.totalorder %s24, 0
      %p93 = por %p91, %p92
      %s95 = sadd.s32 %s94, 1
      %p98 = scmp.eq.s32.totalorder %s18, 1
      %p99 = scmp.ne.s32.totalorder %s94, %s96
      %p100 = scmp.eq.s32.totalorder %s18, 0
      %p101 = por %p99, %p100
      %p102 = scmp.ne.s32.totalorder %s94, %s96
      %p103 = scmp.eq.s32.totalorder %s23, 1
      %p104 = por %p102, %p103
      %p105 = scmp.ne.s32.totalorder %s96, %s97
      %p106 = scmp.eq.s32.totalorder %s23, 0
      %p107 = por %p105, %p106
      %p108 = scmp.ne.s32.totalorder %s96, %s97
      %p109 = scmp.eq.s32.totalorder %s24, 1
      %p110 = por %p108, %p109
      %p112 = scmp.ne.s32.totalorder %s97, %s111
      %p113 = scmp.eq.s32.totalorder %s24, 0
      %p114 = por %p112, %p113
      %s115 = ssub.s32 %s18, %s25
      %p116 = scmp.eq.s32.totalorder %s115, 0
      %s118 = sadd.s32 %s117, 1
      %s119 = scalar_select %p116, %s117, %s118
      %p122 = pneg %p116
      %p123 = scmp.eq.s32.totalorder %s18, 1
      %p124 = por %p122, %p123
      %p125 = scmp.ne.s32.totalorder %s117, %s120
      %p126 = scmp.eq.s32.totalorder %s18, 0
      %p127 = por %p125, %p126
      %p128 = scmp.ne.s32.totalorder %s117, %s120
      %p129 = scmp.eq.s32.totalorder %s23, 1
      %p130 = por %p128, %p129
      %p131 = scmp.ne.s32.totalorder %s120, %s121
      %p132 = scmp.eq.s32.totalorder %s23, 0
      %p133 = por %p131, %p132
      %p134 = scmp.ne.s32.totalorder %s120, %s121
      %p135 = scmp.eq.s32.totalorder %s24, 1
      %p136 = por %p134, %p135
      %p138 = scmp.ne.s32.totalorder %s121, %s137
      %p139 = scmp.eq.s32.totalorder %s24, 0
      %p140 = por %p138, %p139
      %p141 = scmp.le.s32.totalorder 1, %s18
      %p142 = scmp.lt.s32.totalorder %s18, 3
      %p143 = pnand %p141, %p142
      %p144 = pneg %p143
      // Predicated region
      $region9: #{tpu_custom_call.1} parent=5 // pred_check
        _
      $region10: #{tpu_custom_call.1} parent=5 // pred_check_branch
        %146 = sbr.rel (%p143) target = $region12
      $region11: #{tpu_custom_call.1} parent=5 // pred_region
        %s147 = ssub.s32 %s18, 1
        // Predicated region
        $region13: #{tpu_custom_call.1} parent=11 // pred_check
          %p148 = pneg %p65
        $region14: #{tpu_custom_call.1} parent=11 // pred_check_branch
          %150 = sbr.rel (%p148) target = $region16
        $region15: #{tpu_custom_call.1} parent=11 // pred_region
          %152 = vsyncadd [#allocation6], 0
          %s153 = sshll.u32 %s1, 4
          %s154 = int_to_ptr.hbm [resolvable:$true] %s153
          %s155 = sshll.u32 [#allocation5], 4
          %s156 = int_to_ptr.vmem [resolvable:$true] %s155
          %161 = dma.hbm_to_vmem [thread:$0]  %s154, 2048, %s156, [#allocation6], 128, 128, 8
        $region16: #{tpu_custom_call.1} parent=11 // pred_fallthru
          _
        // Predicated region
        $region17: #{tpu_custom_call.1} parent=11 // pred_check
          %p162 = pneg %p86
        $region18: #{tpu_custom_call.1} parent=11 // pred_check_branch
          %164 = sbr.rel (%p162) target = $region20
        $region19: #{tpu_custom_call.1} parent=11 // pred_region
          %166 = vsyncadd [#allocation6], 0
          %s167 = sshll.u32 %s2, 4
          %s168 = int_to_ptr.hbm [resolvable:$true] %s167
          %s169 = sshll.u32 [#allocation7], 4
          %s170 = int_to_ptr.vmem [resolvable:$true] %s169
          %175 = dma.hbm_to_vmem [thread:$0]  %s168, 1024, %s170, [#allocation6], 64, 64, 4
        $region20: #{tpu_custom_call.1} parent=11 // pred_fallthru
          _
        // Predicated region
        $region21: #{tpu_custom_call.1} parent=11 // pred_check
          %p176 = pneg %p107
        $region22: #{tpu_custom_call.1} parent=11 // pred_check_branch
          %178 = sbr.rel (%p176) target = $region24
        $region23: #{tpu_custom_call.1} parent=11 // pred_region
          %180 = vsyncadd [#allocation9], 0
          %s182 = sshll.u32 %s3, 4
          %s183 = int_to_ptr.hbm [resolvable:$true] %s182
          %s184 = sshll.u32 [#allocation8], 4
          %s185 = int_to_ptr.vmem [resolvable:$true] %s184
          %187 = dma.hbm_to_vmem [thread:$0]  %s183, 128, %s185, [#allocation9]
        $region24: #{tpu_custom_call.1} parent=11 // pred_fallthru
          _
      $region12: #{tpu_custom_call.1} parent=5 // pred_fallthru
        _
      %p188 = scmp.lt.s32.totalorder %s18, 2
      // Predicated region
      $region25: #{tpu_custom_call.1} parent=5 // pred_check
        %p189 = pneg %p188
      $region26: #{tpu_custom_call.1} parent=5 // pred_check_branch
        %191 = sbr.rel (%p189) target = $region28
      $region27: #{tpu_custom_call.1} parent=5 // pred_region
        // Predicated region
        $region29: #{tpu_custom_call.1} parent=27 // pred_check
          %p192 = pneg %p38
        $region30: #{tpu_custom_call.1} parent=27 // pred_check_branch
          %194 = sbr.rel (%p192) target = $region32
        $region31: #{tpu_custom_call.1} parent=27 // pred_region
          %s195 = sand.u32 %s28, 1
          %s196 = scalar_lea.sflag [#allocation3], %s195
          %s197 = sand.u32 %s28, 1
          %s198 = smul.addr %s197, 8
          %s199 = scalar_lea.vmem [#allocation2], %s198
          %s200 = smul.u32 2, %s18
          %202 = vsyncadd %s196, 0
          %s203 = smul.addr %s200, 4
          %s204 = scalar_lea.hbm %s0, %s203
          %s205 = sshll.u32 %s204, 4
          %s206 = int_to_ptr.hbm [resolvable:$true] %s205
          %s207 = sshll.u32 %s199, 4
          %s208 = int_to_ptr.vmem [resolvable:$true] %s207
          %213 = dma.hbm_to_vmem [thread:$0]  %s206, 128, %s208, %s196, 64, 64, 4
        $region32: #{tpu_custom_call.1} parent=27 // pred_fallthru
          _
      $region28: #{tpu_custom_call.1} parent=5 // pred_fallthru
        _
      %p214 = scmp.le.s32.totalorder 1, %s18
      %p215 = scmp.lt.s32.totalorder %s18, 3
      %p216 = pnand %p214, %p215
      %p217 = pneg %p216
      // Predicated region
      $region33: #{tpu_custom_call.1} parent=5 // pred_check
        _
      $region34: #{tpu_custom_call.1} parent=5 // pred_check_branch
        %219 = sbr.rel (%p216) target = $region36
      $region35: #{tpu_custom_call.1} parent=5 // pred_region
        %s220 = ssub.s32 %s18, 1
        %s221 = sand.u32 %s31, 1
        %s222 = scalar_lea.sflag [#allocation3], %s221
        %s223 = sand.u32 %s31, 1
        %s224 = smul.addr %s223, 8
        %s225 = scalar_lea.vmem [#allocation2], %s224
        // Predicated region
        $region37: #{tpu_custom_call.1} parent=35 // pred_check
          %p226 = pneg %p44
        $region38: #{tpu_custom_call.1} parent=35 // pred_check_branch
          %228 = sbr.rel (%p226) target = $region40
        $region39: #{tpu_custom_call.1} parent=35 // pred_region
          %230 = dma.done %s222, 128
        $region40: #{tpu_custom_call.1} parent=35 // pred_fallthru
          _
        // Predicated region
        $region41: #{tpu_custom_call.1} parent=35 // pred_check
          %p231 = pneg %p65
        $region42: #{tpu_custom_call.1} parent=35 // pred_check_branch
          %233 = sbr.rel (%p231) target = $region44
        $region43: #{tpu_custom_call.1} parent=35 // pred_region
          %235 = dma.done [#allocation6], 2048
        $region44: #{tpu_custom_call.1} parent=35 // pred_fallthru
          _
        // Predicated region
        $region45: #{tpu_custom_call.1} parent=35 // pred_check
          %p236 = pneg %p86
        $region46: #{tpu_custom_call.1} parent=35 // pred_check_branch
          %238 = sbr.rel (%p236) target = $region48
        $region47: #{tpu_custom_call.1} parent=35 // pred_region
          %240 = dma.done [#allocation6], 1024
        $region48: #{tpu_custom_call.1} parent=35 // pred_fallthru
          _
        // Predicated region
        $region49: #{tpu_custom_call.1} parent=35 // pred_check
          %p241 = pneg %p107
        $region50: #{tpu_custom_call.1} parent=35 // pred_check_branch
          %243 = sbr.rel (%p241) target = $region52
        $region51: #{tpu_custom_call.1} parent=35 // pred_region
          %245 = dma.done [#allocation9], 128
        $region52: #{tpu_custom_call.1} parent=35 // pred_fallthru
          _
        %s246 = sand.u32 %s31, 1
        %s247 = scalar_lea.sflag [#allocation3], %s246
        %s248 = sand.u32 %s31, 1
        %s249 = smul.addr %s248, 8
        %s250 = scalar_lea.vmem [#allocation2], %s249
        %p251 = pneg %p44
        %p252 = pneg %p41
        %p253 = pneg %p65
        %p254 = pneg %p62
        %p255 = pneg %p86
        %p256 = pneg %p83
        %p257 = pneg %p107
        %p258 = pneg %p104
        %p259 = pneg %p133
        %p260 = pneg %p130
        %s261 = sand.u32 %s120, 1
        %s262 = scalar_lea.sflag [#allocation4], %s261
        %s263 = sand.u32 %s120, 1
        %s264 = smul.addr %s263, 16
        %s265 = scalar_lea.vmem [#allocation10], %s264
        %s266 = smul.u32 2, %s23
        %s267 = smul.u32 2, %s23
        %v268 = vld [vmem:[%s225] sm:$0xf]
        %v269 = vld [vmem:[%s225 + $0x4] sm:$0xf]
        %v270 = vld [vmem:[#allocation8] ss:$4 sm:$0x3]
        %v271 = vld [vmem:[#allocation8 + $0x1] sm:$0x1]
        %v272 = vld [vmem:[#allocation8 + $0x2] sm:$0x1]
        %v273 = vld [vmem:[#allocation8 + $0x3] sm:$0x1]
        %v274 = vld [vmem:[#allocation5] sm:$0xff]
        %v275 = vld [vmem:[#allocation5 + $0x8] sm:$0xff]
        %v276 = vld [vmem:[#allocation5 + $0x10] sm:$0xff]
        %v277 = vld [vmem:[#allocation5 + $0x18] sm:$0xff]
        %v278 = vld [vmem:[#allocation5 + $0x20] sm:$0xff]
        %v279 = vld [vmem:[#allocation5 + $0x28] sm:$0xff]
        %v280 = vld [vmem:[#allocation5 + $0x30] sm:$0xff]
        %v281 = vld [vmem:[#allocation5 + $0x38] sm:$0xff]
        %v282 = vld [vmem:[#allocation5 + $0x40] sm:$0xff]
        %v283 = vld [vmem:[#allocation5 + $0x48] sm:$0xff]
        %v284 = vld [vmem:[#allocation5 + $0x50] sm:$0xff]
        %v285 = vld [vmem:[#allocation5 + $0x58] sm:$0xff]
        %v286 = vld [vmem:[#allocation5 + $0x60] sm:$0xff]
        %v287 = vld [vmem:[#allocation5 + $0x68] sm:$0xff]
        %v288 = vld [vmem:[#allocation5 + $0x70] sm:$0xff]
        %v289 = vld [vmem:[#allocation5 + $0x78] sm:$0xff]
        %v291 = vperm.slane %v270, 0
        %v292 = vperm.slane %v270, 1
        %v297 = vunpack.c.l.b16 %v268
        %v298 = vunpack.c.l.b16 %v269
        %v299 = vpack.c.b16 %v298, %v297
        %v317 = vunpack.c.l.b16 %v274
        %v318 = vunpack.c.h.b16 %v274
        %v319 = vunpack.c.l.b16 %v275
        %v320 = vunpack.c.h.b16 %v275
        %v321 = vunpack.c.l.b16 %v276
        %v322 = vunpack.c.h.b16 %v276
        %v323 = vunpack.c.l.b16 %v277
        %v324 = vunpack.c.h.b16 %v277
        %v325 = vunpack.c.l.b16 %v278
        %v326 = vunpack.c.h.b16 %v278
        %v327 = vunpack.c.l.b16 %v279
        %v328 = vunpack.c.h.b16 %v279
        %v329 = vunpack.c.l.b16 %v280
        %v330 = vunpack.c.h.b16 %v280
        %v331 = vunpack.c.l.b16 %v281
        %v332 = vunpack.c.h.b16 %v281
        %v333 = vunpack.c.l.b16 %v282
        %v334 = vunpack.c.h.b16 %v282
        %v335 = vunpack.c.l.b16 %v283
        %v336 = vunpack.c.h.b16 %v283
        %v337 = vunpack.c.l.b16 %v284
        %v338 = vunpack.c.h.b16 %v284
        %v339 = vunpack.c.l.b16 %v285
        %v340 = vunpack.c.h.b16 %v285
        %v341 = vunpack.c.l.b16 %v286
        %v342 = vunpack.c.h.b16 %v286
        %v343 = vunpack.c.l.b16 %v287
        %v344 = vunpack.c.h.b16 %v287
        %v345 = vunpack.c.l.b16 %v288
        %v346 = vunpack.c.h.b16 %v288
        %v347 = vunpack.c.l.b16 %v289
        %v348 = vunpack.c.h.b16 %v289
        %v349 = vpack.c.b16 %v319, %v317
        %v350 = vpack.c.b16 %v320, %v318
        %v351 = vpack.c.b16 %v323, %v321
        %v352 = vpack.c.b16 %v324, %v322
        %v353 = vpack.c.b16 %v327, %v325
        %v354 = vpack.c.b16 %v328, %v326
        %v355 = vpack.c.b16 %v331, %v329
        %v356 = vpack.c.b16 %v332, %v330
        %v357 = vpack.c.b16 %v335, %v333
        %v358 = vpack.c.b16 %v336, %v334
        %v359 = vpack.c.b16 %v339, %v337
        %v360 = vpack.c.b16 %v340, %v338
        %v361 = vpack.c.b16 %v343, %v341
        %v362 = vpack.c.b16 %v344, %v342
        %v363 = vpack.c.b16 %v347, %v345
        %v364 = vpack.c.b16 %v348, %v346
        %381 = vmatpush.bf16.msra.mxu0 %v363
        %382 = vmatpush.bf16.msra.mxu0 %v361
        %383 = vmatpush.bf16.msra.mxu0 %v359
        %384 = vmatpush.bf16.msra.mxu0 %v357
        %385 = vmatpush.bf16.msra.mxu0 %v355
        %386 = vmatpush.bf16.msra.mxu0 %v353
        %387 = vmatpush.bf16.msra.mxu0 %v351
        %388 = vmatpush.bf16.msra.mxu0 %v349
        %389 = vmatmul.bf16.gmra.mxu0 %v299
        %v390 = vpop.f32.mrf.mxu0
        %v391 = vadd.f32 %v291, %v390
        %v392 = vpop.f32.mrf.mxu0
        %v393 = vadd.f32 %v291, %v392
        %394 = vdwg.mxu0
        %395 = vmatpush.bf16.msra.mxu0 %v364
        %396 = vmatpush.bf16.msra.mxu0 %v362
        %397 = vmatpush.bf16.msra.mxu0 %v360
        %398 = vmatpush.bf16.msra.mxu0 %v358
        %399 = vmatpush.bf16.msra.mxu0 %v356
        %400 = vmatpush.bf16.msra.mxu0 %v354
        %401 = vmatpush.bf16.msra.mxu0 %v352
        %402 = vmatpush.bf16.msra.mxu0 %v350
        %403 = vmatmul.bf16.gmra.mxu0 %v299
        %v404 = vpop.f32.mrf.mxu0
        %v405 = vadd.f32 %v292, %v404
        %v406 = vpop.f32.mrf.mxu0
        %v407 = vadd.f32 %v292, %v406
        %408 = vdwg.mxu0
        %v409 = vmax.f32 %v391, 0.0
        %v410 = vmax.f32 %v393, 0.0
        %v411 = vpack.c.bf16 %v410, %v409
        %v412 = vld [vmem:[#allocation7] sm:$0xf]
        %v413 = vld [vmem:[#allocation7 + $0x4] sm:$0xf]
        %v414 = vld [vmem:[#allocation7 + $0x8] sm:$0xf]
        %v415 = vld [vmem:[#allocation7 + $0xc] sm:$0xf]
        %v416 = vld [vmem:[#allocation7 + $0x10] sm:$0xf]
        %v417 = vld [vmem:[#allocation7 + $0x14] sm:$0xf]
        %v418 = vld [vmem:[#allocation7 + $0x18] sm:$0xf]
        %v419 = vld [vmem:[#allocation7 + $0x1c] sm:$0xf]
        %v420 = vld [vmem:[#allocation7 + $0x20] sm:$0xf]
        %v421 = vld [vmem:[#allocation7 + $0x24] sm:$0xf]
        %v422 = vld [vmem:[#allocation7 + $0x28] sm:$0xf]
        %v423 = vld [vmem:[#allocation7 + $0x2c] sm:$0xf]
        %v424 = vld [vmem:[#allocation7 + $0x30] sm:$0xf]
        %v425 = vld [vmem:[#allocation7 + $0x34] sm:$0xf]
        %v426 = vld [vmem:[#allocation7 + $0x38] sm:$0xf]
        %v427 = vld [vmem:[#allocation7 + $0x3c] sm:$0xf]
        %v428 = vperm.slane %v271, 0
        %v445 = vunpack.c.l.b16 %v412
        %v446 = vunpack.c.l.b16 %v413
        %v447 = vunpack.c.l.b16 %v414
        %v448 = vunpack.c.l.b16 %v415
        %v449 = vunpack.c.l.b16 %v416
        %v450 = vunpack.c.l.b16 %v417
        %v451 = vunpack.c.l.b16 %v418
        %v452 = vunpack.c.l.b16 %v419
        %v453 = vunpack.c.l.b16 %v420
        %v454 = vunpack.c.l.b16 %v421
        %v455 = vunpack.c.l.b16 %v422
        %v456 = vunpack.c.l.b16 %v423
        %v457 = vunpack.c.l.b16 %v424
        %v458 = vunpack.c.l.b16 %v425
        %v459 = vunpack.c.l.b16 %v426
        %v460 = vunpack.c.l.b16 %v427
        %v461 = vpack.c.b16 %v446, %v445
        %v462 = vpack.c.b16 %v448, %v447
        %v463 = vpack.c.b16 %v450, %v449
        %v464 = vpack.c.b16 %v452, %v451
        %v465 = vpack.c.b16 %v454, %v453
        %v466 = vpack.c.b16 %v456, %v455
        %v467 = vpack.c.b16 %v458, %v457
        %v468 = vpack.c.b16 %v460, %v459
        %477 = vmatpush.bf16.msra.mxu0 %v468
        %478 = vmatpush.bf16.msra.mxu0 %v467
        %479 = vmatpush.bf16.msra.mxu0 %v466
        %480 = vmatpush.bf16.msra.mxu0 %v465
        %481 = vmatpush.bf16.msra.mxu0 %v464
        %482 = vmatpush.bf16.msra.mxu0 %v463
        %483 = vmatpush.bf16.msra.mxu0 %v462
        %484 = vmatpush.bf16.msra.mxu0 %v461
        %485 = vmatmul.bf16.gmra.mxu0 %v411
        %v486 = vpop.f32.mrf.mxu0
        %v487 = vadd.f32 %v428, %v486
        %v488 = vpop.f32.mrf.mxu0
        %v489 = vadd.f32 %v428, %v488
        %490 = vdwg.mxu0
        %v491 = vadd.f32 %v405, %v487
        %v492 = vadd.f32 %v407, %v489
        %493 = vadd.xlane.f32.xlu0 %v491
        %v494 = vpop.xlane.xlu0 %493
        %495 = vadd.xlane.f32.xlu0 %v492
        %v496 = vpop.xlane.xlu0 %495
        %v497 = vmul.f32 %v494, 0.03125
        %v498 = vmul.f32 %v496, 0.03125
        %v499 = vmul.f32 %v491, %v491
        %v500 = vmul.f32 %v492, %v492
        %501 = vadd.xlane.f32.xlu0 %v499
        %v502 = vpop.xlane.xlu0 %501
        %503 = vadd.xlane.f32.xlu0 %v500
        %v504 = vpop.xlane.xlu0 %503
        %v505 = vmul.f32 %v502, 0.03125
        %v506 = vmul.f32 %v504, 0.03125
        %v507 = vmul.f32 %v497, %v497
        %v508 = vmul.f32 %v498, %v498
        %v509 = vsub.f32 %v505, %v507
        %v510 = vsub.f32 %v506, %v508
        %v511 = vmax.f32 %v509, 0.0
        %v512 = vmax.f32 %v510, 0.0
        %v513 = vsub.f32 %v491, %v497
        %v514 = vsub.f32 %v492, %v498
        %v515 = vadd.f32 %v511, 1e-05
        %v516 = vadd.f32 %v512, 1e-05
        %v517 = vrsqrt.pop %v515
        %v518 = vmul.f32 %v517, %v515
        %v519 = vmul.f32 %v518, %v517
        %v520 = vmul.f32 0.5, %v519
        %v521 = vsub.f32 1.5, %v520
        %v522 = vmul.f32 %v517, %v521
        %vm523 = vweird.f32 %v515
        %vm524 = vweird.f32 %v517
        %vm525 = vmor %vm523, %vm524
        %v526 = vsel %vm525, %v517, %v522
        %v527 = vrsqrt.pop %v516
        %v528 = vmul.f32 %v527, %v516
        %v529 = vmul.f32 %v528, %v527
        %v530 = vmul.f32 0.5, %v529
        %v531 = vsub.f32 1.5, %v530
        %v532 = vmul.f32 %v527, %v531
        %vm533 = vweird.f32 %v516
        %vm534 = vweird.f32 %v527
        %vm535 = vmor %vm533, %vm534
        %v536 = vsel %vm535, %v527, %v532
        %v537 = vmul.f32 %v513, %v526
        %v538 = vmul.f32 %v514, %v536
        %v539 = vperm.slane %v272, 0
        %v540 = vmul.f32 %v537, %v539
        %v541 = vmul.f32 %v538, %v539
        %v542 = vperm.slane %v273, 0
        %v543 = vadd.f32 %v540, %v542
        %v544 = vadd.f32 %v541, %v542
        %545 = vst [vmem:[%s265] sm:$0xff] %v543
        %546 = vst [vmem:[%s265 + $0x8] sm:$0xff] %v544
        %s547 = sand.u32 %s120, 1
        %s548 = scalar_lea.sflag [#allocation4], %s547
        %s549 = sand.u32 %s120, 1
        %s550 = smul.addr %s549, 16
        %s551 = scalar_lea.vmem [#allocation10], %s550
        // Predicated region
        $region53: #{tpu_custom_call.1} parent=35 // pred_check
          %p552 = pneg %p130
        $region54: #{tpu_custom_call.1} parent=35 // pred_check_branch
          %554 = sbr.rel (%p552) target = $region56
        $region55: #{tpu_custom_call.1} parent=35 // pred_region
          %s555 = smul.u32 2, %s23
          %557 = vsyncadd %s548, 0
          %s558 = smul.addr %s555, 8
          %s559 = scalar_lea.hbm %s4, %s558
          %s560 = sshll.u32 %s551, 4
          %s561 = int_to_ptr.vmem [resolvable:$true] %s560
          %s562 = sshll.u32 %s559, 4
          %s563 = int_to_ptr.hbm [resolvable:$true] %s562
          %568 = dma.vmem_to_hbm [thread:$0]  %s561, 256, %s563, %s548, 128, 128, 8
        $region56: #{tpu_custom_call.1} parent=35 // pred_fallthru
          _
      $region36: #{tpu_custom_call.1} parent=5 // pred_fallthru
        _
      %p569 = scmp.le.s32.totalorder 2, %s18
      // Predicated region
      $region57: #{tpu_custom_call.1} parent=5 // pred_check
        %p570 = pneg %p569
      $region58: #{tpu_custom_call.1} parent=5 // pred_check_branch
        %572 = sbr.rel (%p570) target = $region60
      $region59: #{tpu_custom_call.1} parent=5 // pred_region
        %s573 = ssub.s32 %s18, 2
        // Predicated region
        $region61: #{tpu_custom_call.1} parent=59 // pred_check
          %p574 = pneg %p136
        $region62: #{tpu_custom_call.1} parent=59 // pred_check_branch
          %576 = sbr.rel (%p574) target = $region64
        $region63: #{tpu_custom_call.1} parent=59 // pred_region
          %s577 = sand.u32 %s121, 1
          %s578 = scalar_lea.sflag [#allocation4], %s577
          %s579 = sand.u32 %s121, 1
          %s580 = smul.addr %s579, 16
          %s581 = scalar_lea.vmem [#allocation10], %s580
          %583 = dma.done %s578, 256
        $region64: #{tpu_custom_call.1} parent=59 // pred_fallthru
          _
      $region60: #{tpu_custom_call.1} parent=5 // pred_fallthru
        _
    $region6: #{tpu_custom_call.1} parent=1 // loop_footer
      %s22 = sadd.s32 1, %s18
    $region7: #{tpu_custom_call.1} parent=1 // loop_footer_branch
      %17 = sbr.rel target = $region3
    $region8: #{tpu_custom_call.1} parent=1 // loop_exit
      _
    %584 = vsyncpa [#allocation3], 1
    %s585 = scalar_lea.sflag [#allocation3], 1
    %586 = vsyncpa %s585, 1
    %587 = vsyncpa [#allocation6], 1
    %588 = vsyncpa [#allocation9], 1
    %589 = vsyncpa [#allocation4], 1
    %s590 = scalar_lea.sflag [#allocation4], 1
    %591 = vsyncpa %s590, 1

// kernel: tpu_custom_call.1
$region0: #{tpu_custom_call.1}
  #allocation0 [shape = 'u32[]', space=smem, size = 0x4, offset = 0x4, fixed_abs, tag = 'smem constant byte address 0x4 - core index']
  #allocation1 [shape = 'u32[72,128]{1,0:T(1,128)}', space=vmem, size = 0x9000, scoped, tag = 'internal scratch']
  %s0 = inlined_call_operand.hbm [shape: bf16[32,128], index: 0, kind: input, shape index: {}]
  %s1 = inlined_call_operand.hbm [shape: bf16[128,256], index: 1, kind: input, shape index: {}]
  %s2 = inlined_call_operand.hbm [shape: bf16[128,128], index: 2, kind: input, shape index: {}]
  %s3 = inlined_call_operand.hbm [shape: f32[4,256], index: 3, kind: input, shape index: {}]
  %s4 = inlined_call_operand.hbm [shape: f32[32,128], index: 4, kind: output, shape index: {}]
  %s5 = sld [smem:[#allocation0]]
  $region65: #{tpu_custom_call.1} parent=0
    _
  %s7 = ssub.s32 1, %s5
  %s8 = scalar_select 0, %s7, %s5
  $region1: #{tpu_custom_call.1} parent=0
    #allocation2 [shape = 'u8[8192]{0}', space=vmem, size = 0x2000, scoped, tag = 'input window, operand 0']
    #allocation3 [shape = 's32[2]{0}', space=sflag, size = 0x8, scoped, tag = 'scoped memory for tpu_custom_call.1']
    #allocation4 [shape = 's32[2]{0}', space=sflag, size = 0x8, scoped, tag = 'scoped memory for tpu_custom_call.1']
    #allocation5 [shape = 'u8[65536]{0}', space=vmem, size = 0x10000, scoped, tag = 'input window, operand 1, single buffered']
    #allocation6 [shape = 's32[1]{0}', space=sflag, size = 0x4, scoped, tag = 'scoped memory for tpu_custom_call.1']
    #allocation7 [shape = 'u8[32768]{0}', space=vmem, size = 0x8000, scoped, tag = 'input window, operand 2, single buffered']
    #allocation8 [shape = 'u8[4096]{0}', space=vmem, size = 0x1000, scoped, tag = 'input window, operand 3, single buffered']
    #allocation9 [shape = 's32[1]{0}', space=sflag, size = 0x4, scoped, tag = 'scoped memory for tpu_custom_call.1']
    #allocation10 [shape = 'u8[16384]{0}', space=vmem, size = 0x4000, scoped, tag = 'output window, operand 0']
    %9 = vsyncpa [#allocation3], 0
    %s10 = scalar_lea.sflag [#allocation3], 1
    %11 = vsyncpa %s10, 0
    %12 = vsyncpa [#allocation6], 0
    %13 = vsyncpa [#allocation9], 0
    %14 = vsyncpa [#allocation4], 0
    %s15 = scalar_lea.sflag [#allocation4], 1
    %16 = vsyncpa %s15, 0
    loop: start=0, step=1, limit=4
    $region2: #{tpu_custom_call.1} parent=1 // loop_pre_header
      _
    $region3: #{tpu_custom_call.1} parent=1 // loop_header
      %s18 = sphi 0, %s22
      %p19 = scmp.ge.s32.totalorder %s18, 4
      %s28 = sphi 0, %s30
      %s31 = sphi 0, %s28
      %s32 = sphi 0, %s31
      %s48 = sphi 0, %s32
      %s52 = sphi 0, %s52
      %s54 = sphi 0, %s52
      %s55 = sphi 0, %s54
      %s69 = sphi 0, %s55
      %s73 = sphi 0, %s73
      %s75 = sphi 0, %s73
      %s76 = sphi 0, %s75
      %s90 = sphi 0, %s76
      %s94 = sphi 0, %s94
      %s96 = sphi 0, %s94
      %s97 = sphi 0, %s96
      %s111 = sphi 0, %s97
      %s117 = sphi 0, %s119
      %s120 = sphi 0, %s117
      %s121 = sphi 0, %s120
      %s137 = sphi 0, %s121
    $region4: #{tpu_custom_call.1} parent=1 // loop_header_branch
      %21 = sbr.rel (%p19) target = $region8
    $region5: #{tpu_custom_call.1} parent=1 // loop_body
      %s23 = ssub.s32 %s18, 1
      %s24 = ssub.s32 %s18, 2
      %s25 = sadd.s32 %s18, 1
      %s26 = ssub.s32 %s18, %s25
      %p27 = scmp.eq.s32.totalorder %s26, 0
      %s29 = sadd.s32 %s28, 1
      %s30 = scalar_select %p27, %s28, %s29
      %p33 = pneg %p27
      %p34 = scmp.eq.s32.totalorder %s18, 1
      %p35 = por %p33, %p34
      %p36 = scmp.ne.s32.totalorder %s28, %s31
      %p37 = scmp.eq.s32.totalorder %s18, 0
      %p38 = por %p36, %p37
      %p39 = scmp.ne.s32.totalorder %s28, %s31
      %p40 = scmp.eq.s32.totalorder %s23, 1
      %p41 = por %p39, %p40
      %p42 = scmp.ne.s32.totalorder %s31, %s32
      %p43 = scmp.eq.s32.totalorder %s23, 0
      %p44 = por %p42, %p43
      %p45 = scmp.ne.s32.totalorder %s31, %s32
      %p46 = scmp.eq.s32.totalorder %s24, 1
      %p47 = por %p45, %p46
      %p49 = scmp.ne.s32.totalorder %s32, %s48
      %p50 = scmp.eq.s32.totalorder %s24, 0
      %p51 = por %p49, %p50
      %s53 = sadd.s32 %s52, 1
      %p56 = scmp.eq.s32.totalorder %s18, 1
      %p57 = scmp.ne.s32.totalorder %s52, %s54
      %p58 = scmp.eq.s32.totalorder %s18, 0
      %p59 = por %p57, %p58
      %p60 = scmp.ne.s32.totalorder %s52, %s54
      %p61 = scmp.eq.s32.totalorder %s23, 1
      %p62 = por %p60, %p61
      %p63 = scmp.ne.s32.totalorder %s54, %s55
      %p64 = scmp.eq.s32.totalorder %s23, 0
      %p65 = por %p63, %p64
      %p66 = scmp.ne.s32.totalorder %s54, %s55
      %p67 = scmp.eq.s32.totalorder %s24, 1
      %p68 = por %p66, %p67
      %p70 = scmp.ne.s32.totalorder %s55, %s69
      %p71 = scmp.eq.s32.totalorder %s24, 0
      %p72 = por %p70, %p71
      %s74 = sadd.s32 %s73, 1
      %p77 = scmp.eq.s32.totalorder %s18, 1
      %p78 = scmp.ne.s32.totalorder %s73, %s75
      %p79 = scmp.eq.s32.totalorder %s18, 0
      %p80 = por %p78, %p79
      %p81 = scmp.ne.s32.totalorder %s73, %s75
      %p82 = scmp.eq.s32.totalorder %s23, 1
      %p83 = por %p81, %p82
      %p84 = scmp.ne.s32.totalorder %s75, %s76
      %p85 = scmp.eq.s32.totalorder %s23, 0
      %p86 = por %p84, %p85
      %p87 = scmp.ne.s32.totalorder %s75, %s76
      %p88 = scmp.eq.s32.totalorder %s24, 1
      %p89 = por %p87, %p88
      %p91 = scmp.ne.s32.totalorder %s76, %s90
      %p92 = scmp.eq.s32.totalorder %s24, 0
      %p93 = por %p91, %p92
      %s95 = sadd.s32 %s94, 1
      %p98 = scmp.eq.s32.totalorder %s18, 1
      %p99 = scmp.ne.s32.totalorder %s94, %s96
      %p100 = scmp.eq.s32.totalorder %s18, 0
      %p101 = por %p99, %p100
      %p102 = scmp.ne.s32.totalorder %s94, %s96
      %p103 = scmp.eq.s32.totalorder %s23, 1
      %p104 = por %p102, %p103
      %p105 = scmp.ne.s32.totalorder %s96, %s97
      %p106 = scmp.eq.s32.totalorder %s23, 0
      %p107 = por %p105, %p106
      %p108 = scmp.ne.s32.totalorder %s96, %s97
      %p109 = scmp.eq.s32.totalorder %s24, 1
      %p110 = por %p108, %p109
      %p112 = scmp.ne.s32.totalorder %s97, %s111
      %p113 = scmp.eq.s32.totalorder %s24, 0
      %p114 = por %p112, %p113
      %s115 = ssub.s32 %s18, %s25
      %p116 = scmp.eq.s32.totalorder %s115, 0
      %s118 = sadd.s32 %s117, 1
      %s119 = scalar_select %p116, %s117, %s118
      %p122 = pneg %p116
      %p123 = scmp.eq.s32.totalorder %s18, 1
      %p124 = por %p122, %p123
      %p125 = scmp.ne.s32.totalorder %s117, %s120
      %p126 = scmp.eq.s32.totalorder %s18, 0
      %p127 = por %p125, %p126
      %p128 = scmp.ne.s32.totalorder %s117, %s120
      %p129 = scmp.eq.s32.totalorder %s23, 1
      %p130 = por %p128, %p129
      %p131 = scmp.ne.s32.totalorder %s120, %s121
      %p132 = scmp.eq.s32.totalorder %s23, 0
      %p133 = por %p131, %p132
      %p134 = scmp.ne.s32.totalorder %s120, %s121
      %p135 = scmp.eq.s32.totalorder %s24, 1
      %p136 = por %p134, %p135
      %p138 = scmp.ne.s32.totalorder %s121, %s137
      %p139 = scmp.eq.s32.totalorder %s24, 0
      %p140 = por %p138, %p139
      %p141 = scmp.le.s32.totalorder 1, %s18
      %p142 = scmp.lt.s32.totalorder %s18, 3
      %p143 = pnand %p141, %p142
      %p144 = pneg %p143
      // Predicated region
      $region9: #{tpu_custom_call.1} parent=5 // pred_check
        _
      $region10: #{tpu_custom_call.1} parent=5 // pred_check_branch
        %146 = sbr.rel (%p143) target = $region12
      $region11: #{tpu_custom_call.1} parent=5 // pred_region
        %s147 = ssub.s32 %s18, 1
        // Predicated region
        $region13: #{tpu_custom_call.1} parent=11 // pred_check
          %p148 = pneg %p65
        $region14: #{tpu_custom_call.1} parent=11 // pred_check_branch
          %150 = sbr.rel (%p148) target = $region16
        $region15: #{tpu_custom_call.1} parent=11 // pred_region
          %152 = vsyncadd [#allocation6], 0
          %s153 = sshll.u32 %s1, 4
          %s154 = int_to_ptr.hbm [resolvable:$true] %s153
          %s155 = sshll.u32 [#allocation5], 4
          %s156 = int_to_ptr.vmem [resolvable:$true] %s155
          %161 = dma.hbm_to_vmem [thread:$0]  %s154, 2048, %s156, [#allocation6], 128, 128, 8
        $region16: #{tpu_custom_call.1} parent=11 // pred_fallthru
          _
        // Predicated region
        $region17: #{tpu_custom_call.1} parent=11 // pred_check
          %p162 = pneg %p86
        $region18: #{tpu_custom_call.1} parent=11 // pred_check_branch
          %164 = sbr.rel (%p162) target = $region20
        $region19: #{tpu_custom_call.1} parent=11 // pred_region
          %166 = vsyncadd [#allocation6], 0
          %s167 = sshll.u32 %s2, 4
          %s168 = int_to_ptr.hbm [resolvable:$true] %s167
          %s169 = sshll.u32 [#allocation7], 4
          %s170 = int_to_ptr.vmem [resolvable:$true] %s169
          %175 = dma.hbm_to_vmem [thread:$0]  %s168, 1024, %s170, [#allocation6], 64, 64, 4
        $region20: #{tpu_custom_call.1} parent=11 // pred_fallthru
          _
        // Predicated region
        $region21: #{tpu_custom_call.1} parent=11 // pred_check
          %p176 = pneg %p107
        $region22: #{tpu_custom_call.1} parent=11 // pred_check_branch
          %178 = sbr.rel (%p176) target = $region24
        $region23: #{tpu_custom_call.1} parent=11 // pred_region
          %180 = vsyncadd [#allocation9], 0
          %s182 = sshll.u32 %s3, 4
          %s183 = int_to_ptr.hbm [resolvable:$true] %s182
          %s184 = sshll.u32 [#allocation8], 4
          %s185 = int_to_ptr.vmem [resolvable:$true] %s184
          %187 = dma.hbm_to_vmem [thread:$0]  %s183, 128, %s185, [#allocation9]
        $region24: #{tpu_custom_call.1} parent=11 // pred_fallthru
          _
      $region12: #{tpu_custom_call.1} parent=5 // pred_fallthru
        _
      %p188 = scmp.lt.s32.totalorder %s18, 2
      // Predicated region
      $region25: #{tpu_custom_call.1} parent=5 // pred_check
        %p189 = pneg %p188
      $region26: #{tpu_custom_call.1} parent=5 // pred_check_branch
        %191 = sbr.rel (%p189) target = $region28
      $region27: #{tpu_custom_call.1} parent=5 // pred_region
        // Predicated region
        $region29: #{tpu_custom_call.1} parent=27 // pred_check
          %p192 = pneg %p38
        $region30: #{tpu_custom_call.1} parent=27 // pred_check_branch
          %194 = sbr.rel (%p192) target = $region32
        $region31: #{tpu_custom_call.1} parent=27 // pred_region
          %s195 = sand.u32 %s28, 1
          %s196 = scalar_lea.sflag [#allocation3], %s195
          %s197 = sand.u32 %s28, 1
          %s198 = smul.addr %s197, 8
          %s199 = scalar_lea.vmem [#allocation2], %s198
          %s200 = smul.u32 2, %s18
          %202 = vsyncadd %s196, 0
          %s203 = smul.addr %s200, 4
          %s204 = scalar_lea.hbm %s0, %s203
          %s205 = sshll.u32 %s204, 4
          %s206 = int_to_ptr.hbm [resolvable:$true] %s205
          %s207 = sshll.u32 %s199, 4
          %s208 = int_to_ptr.vmem [resolvable:$true] %s207
          %213 = dma.hbm_to_vmem [thread:$0]  %s206, 128, %s208, %s196, 64, 64, 4
        $region32: #{tpu_custom_call.1} parent=27 // pred_fallthru
          _
      $region28: #{tpu_custom_call.1} parent=5 // pred_fallthru
        _
      %p214 = scmp.le.s32.totalorder 1, %s18
      %p215 = scmp.lt.s32.totalorder %s18, 3
      %p216 = pnand %p214, %p215
      %p217 = pneg %p216
      // Predicated region
      $region33: #{tpu_custom_call.1} parent=5 // pred_check
        _
      $region34: #{tpu_custom_call.1} parent=5 // pred_check_branch
        %219 = sbr.rel (%p216) target = $region36
      $region35: #{tpu_custom_call.1} parent=5 // pred_region
        %s220 = ssub.s32 %s18, 1
        %s221 = sand.u32 %s31, 1
        %s222 = scalar_lea.sflag [#allocation3], %s221
        %s223 = sand.u32 %s31, 1
        %s224 = smul.addr %s223, 8
        %s225 = scalar_lea.vmem [#allocation2], %s224
        // Predicated region
        $region37: #{tpu_custom_call.1} parent=35 // pred_check
          %p226 = pneg %p44
        $region38: #{tpu_custom_call.1} parent=35 // pred_check_branch
          %228 = sbr.rel (%p226) target = $region40
        $region39: #{tpu_custom_call.1} parent=35 // pred_region
          %230 = dma.done %s222, 128
        $region40: #{tpu_custom_call.1} parent=35 // pred_fallthru
          _
        // Predicated region
        $region41: #{tpu_custom_call.1} parent=35 // pred_check
          %p231 = pneg %p65
        $region42: #{tpu_custom_call.1} parent=35 // pred_check_branch
          %233 = sbr.rel (%p231) target = $region44
        $region43: #{tpu_custom_call.1} parent=35 // pred_region
          %235 = dma.done [#allocation6], 2048
        $region44: #{tpu_custom_call.1} parent=35 // pred_fallthru
          _
        // Predicated region
        $region45: #{tpu_custom_call.1} parent=35 // pred_check
          %p236 = pneg %p86
        $region46: #{tpu_custom_call.1} parent=35 // pred_check_branch
          %238 = sbr.rel (%p236) target = $region48
        $region47: #{tpu_custom_call.1} parent=35 // pred_region
          %240 = dma.done [#allocation6], 1024
        $region48: #{tpu_custom_call.1} parent=35 // pred_fallthru
          _
        // Predicated region
        $region49: #{tpu_custom_call.1} parent=35 // pred_check
          %p241 = pneg %p107
        $region50: #{tpu_custom_call.1} parent=35 // pred_check_branch
          %243 = sbr.rel (%p241) target = $region52
        $region51: #{tpu_custom_call.1} parent=35 // pred_region
          %245 = dma.done [#allocation9], 128
        $region52: #{tpu_custom_call.1} parent=35 // pred_fallthru
          _
        %s246 = sand.u32 %s31, 1
        %s247 = scalar_lea.sflag [#allocation3], %s246
        %s248 = sand.u32 %s31, 1
        %s249 = smul.addr %s248, 8
        %s250 = scalar_lea.vmem [#allocation2], %s249
        %p251 = pneg %p44
        %p252 = pneg %p41
        %p253 = pneg %p65
        %p254 = pneg %p62
        %p255 = pneg %p86
        %p256 = pneg %p83
        %p257 = pneg %p107
        %p258 = pneg %p104
        %p259 = pneg %p133
        %p260 = pneg %p130
        %s261 = sand.u32 %s120, 1
        %s262 = scalar_lea.sflag [#allocation4], %s261
        %s263 = sand.u32 %s120, 1
        %s264 = smul.addr %s263, 16
        %s265 = scalar_lea.vmem [#allocation10], %s264
        %s266 = smul.u32 2, %s23
        %s267 = smul.u32 2, %s23
        %v268 = vld [vmem:[%s225] sm:$0xf]
        %v269 = vld [vmem:[%s225 + $0x4] sm:$0xf]
        %v270 = vld [vmem:[#allocation8] ss:$4 sm:$0x3]
        %v271 = vld [vmem:[#allocation8 + $0x1] sm:$0x1]
        %v272 = vld [vmem:[#allocation8 + $0x2] sm:$0x1]
        %v273 = vld [vmem:[#allocation8 + $0x3] sm:$0x1]
        %v274 = vld [vmem:[#allocation5] sm:$0xff]
        %v275 = vld [vmem:[#allocation5 + $0x8] sm:$0xff]
        %v276 = vld [vmem:[#allocation5 + $0x10] sm:$0xff]
        %v277 = vld [vmem:[#allocation5 + $0x18] sm:$0xff]
        %v278 = vld [vmem:[#allocation5 + $0x20] sm:$0xff]
        %v279 = vld [vmem:[#allocation5 + $0x28] sm:$0xff]
        %v280 = vld [vmem:[#allocation5 + $0x30] sm:$0xff]
        %v281 = vld [vmem:[#allocation5 + $0x38] sm:$0xff]
        %v282 = vld [vmem:[#allocation5 + $0x40] sm:$0xff]
        %v283 = vld [vmem:[#allocation5 + $0x48] sm:$0xff]
        %v284 = vld [vmem:[#allocation5 + $0x50] sm:$0xff]
        %v285 = vld [vmem:[#allocation5 + $0x58] sm:$0xff]
        %v286 = vld [vmem:[#allocation5 + $0x60] sm:$0xff]
        %v287 = vld [vmem:[#allocation5 + $0x68] sm:$0xff]
        %v288 = vld [vmem:[#allocation5 + $0x70] sm:$0xff]
        %v289 = vld [vmem:[#allocation5 + $0x78] sm:$0xff]
        %v291 = vperm.slane %v270, 0
        %v292 = vperm.slane %v270, 1
        %v297 = vunpack.c.l.b16 %v268
        %v298 = vunpack.c.l.b16 %v269
        %v299 = vpack.c.b16 %v298, %v297
        %v317 = vunpack.c.l.b16 %v274
        %v318 = vunpack.c.h.b16 %v274
        %v319 = vunpack.c.l.b16 %v275
        %v320 = vunpack.c.h.b16 %v275
        %v321 = vunpack.c.l.b16 %v276
        %v322 = vunpack.c.h.b16 %v276
        %v323 = vunpack.c.l.b16 %v277
        %v324 = vunpack.c.h.b16 %v277
        %v325 = vunpack.c.l.b16 %v278
        %v326 = vunpack.c.h.b16 %v278
        %v327 = vunpack.c.l.b16 %v279
        %v328 = vunpack.c.h.b16 %v279
        %v329 = vunpack.c.l.b16 %v280
        %v330 = vunpack.c.h.b16 %v280
        %v331 = vunpack.c.l.b16 %v281
        %v332 = vunpack.c.h.b16 %v281
        %v333 = vunpack.c.l.b16 %v282
        %v334 = vunpack.c.h.b16 %v282
        %v335 = vunpack.c.l.b16 %v283
        %v336 = vunpack.c.h.b16 %v283
        %v337 = vunpack.c.l.b16 %v284
        %v338 = vunpack.c.h.b16 %v284
        %v339 = vunpack.c.l.b16 %v285
        %v340 = vunpack.c.h.b16 %v285
        %v341 = vunpack.c.l.b16 %v286
        %v342 = vunpack.c.h.b16 %v286
        %v343 = vunpack.c.l.b16 %v287
        %v344 = vunpack.c.h.b16 %v287
        %v345 = vunpack.c.l.b16 %v288
        %v346 = vunpack.c.h.b16 %v288
        %v347 = vunpack.c.l.b16 %v289
        %v348 = vunpack.c.h.b16 %v289
        %v349 = vpack.c.b16 %v319, %v317
        %v350 = vpack.c.b16 %v320, %v318
        %v351 = vpack.c.b16 %v323, %v321
        %v352 = vpack.c.b16 %v324, %v322
        %v353 = vpack.c.b16 %v327, %v325
        %v354 = vpack.c.b16 %v328, %v326
        %v355 = vpack.c.b16 %v331, %v329
        %v356 = vpack.c.b16 %v332, %v330
        %v357 = vpack.c.b16 %v335, %v333
        %v358 = vpack.c.b16 %v336, %v334
        %v359 = vpack.c.b16 %v339, %v337
        %v360 = vpack.c.b16 %v340, %v338
        %v361 = vpack.c.b16 %v343, %v341
        %v362 = vpack.c.b16 %v344, %v342
        %v363 = vpack.c.b16 %v347, %v345
        %v364 = vpack.c.b16 %v348, %v346
        %381 = vmatpush.bf16.msra.mxu0 %v363
        %382 = vmatpush.bf16.msra.mxu0 %v361
        %383 = vmatpush.bf16.msra.mxu0 %v359
        %384 = vmatpush.bf16.msra.mxu0 %v357
        %385 = vmatpush.bf16.msra.mxu0 %v355
        %386 = vmatpush.bf16.msra.mxu0 %v353
        %387 = vmatpush.bf16.msra.mxu0 %v351
        %388 = vmatpush.bf16.msra.mxu0 %v349
        %389 = vmatmul.bf16.gmra.mxu0 %v299
        %v390 = vpop.f32.mrf.mxu0
        %v391 = vadd.f32 %v291, %v390
        %v392 = vpop.f32.mrf.mxu0
        %v393 = vadd.f32 %v291, %v392
        %394 = vdwg.mxu0
        %395 = vmatpush.bf16.msra.mxu0 %v364
        %396 = vmatpush.bf16.msra.mxu0 %v362
        %397 = vmatpush.bf16.msra.mxu0 %v360
        %398 = vmatpush.bf16.msra.mxu0 %v358
        %399 = vmatpush.bf16.msra.mxu0 %v356
        %400 = vmatpush.bf16.msra.mxu0 %v354
        %401 = vmatpush.bf16.msra.mxu0 %v352
        %402 = vmatpush.bf16.msra.mxu0 %v350
        %403 = vmatmul.bf16.gmra.mxu0 %v299
        %v404 = vpop.f32.mrf.mxu0
        %v405 = vadd.f32 %v292, %v404
        %v406 = vpop.f32.mrf.mxu0
        %v407 = vadd.f32 %v292, %v406
        %408 = vdwg.mxu0
        %v409 = vmax.f32 %v391, 0.0
        %v410 = vmax.f32 %v393, 0.0
        %v411 = vpack.c.bf16 %v410, %v409
        %v412 = vld [vmem:[#allocation7] sm:$0xf]
        %v413 = vld [vmem:[#allocation7 + $0x4] sm:$0xf]
        %v414 = vld [vmem:[#allocation7 + $0x8] sm:$0xf]
        %v415 = vld [vmem:[#allocation7 + $0xc] sm:$0xf]
        %v416 = vld [vmem:[#allocation7 + $0x10] sm:$0xf]
        %v417 = vld [vmem:[#allocation7 + $0x14] sm:$0xf]
        %v418 = vld [vmem:[#allocation7 + $0x18] sm:$0xf]
        %v419 = vld [vmem:[#allocation7 + $0x1c] sm:$0xf]
        %v420 = vld [vmem:[#allocation7 + $0x20] sm:$0xf]
        %v421 = vld [vmem:[#allocation7 + $0x24] sm:$0xf]
        %v422 = vld [vmem:[#allocation7 + $0x28] sm:$0xf]
        %v423 = vld [vmem:[#allocation7 + $0x2c] sm:$0xf]
        %v424 = vld [vmem:[#allocation7 + $0x30] sm:$0xf]
        %v425 = vld [vmem:[#allocation7 + $0x34] sm:$0xf]
        %v426 = vld [vmem:[#allocation7 + $0x38] sm:$0xf]
        %v427 = vld [vmem:[#allocation7 + $0x3c] sm:$0xf]
        %v428 = vperm.slane %v271, 0
        %v445 = vunpack.c.l.b16 %v412
        %v446 = vunpack.c.l.b16 %v413
        %v447 = vunpack.c.l.b16 %v414
        %v448 = vunpack.c.l.b16 %v415
        %v449 = vunpack.c.l.b16 %v416
        %v450 = vunpack.c.l.b16 %v417
        %v451 = vunpack.c.l.b16 %v418
        %v452 = vunpack.c.l.b16 %v419
        %v453 = vunpack.c.l.b16 %v420
        %v454 = vunpack.c.l.b16 %v421
        %v455 = vunpack.c.l.b16 %v422
        %v456 = vunpack.c.l.b16 %v423
        %v457 = vunpack.c.l.b16 %v424
        %v458 = vunpack.c.l.b16 %v425
        %v459 = vunpack.c.l.b16 %v426
        %v460 = vunpack.c.l.b16 %v427
        %v461 = vpack.c.b16 %v446, %v445
        %v462 = vpack.c.b16 %v448, %v447
        %v463 = vpack.c.b16 %v450, %v449
        %v464 = vpack.c.b16 %v452, %v451
        %v465 = vpack.c.b16 %v454, %v453
        %v466 = vpack.c.b16 %v456, %v455
        %v467 = vpack.c.b16 %v458, %v457
        %v468 = vpack.c.b16 %v460, %v459
        %477 = vmatpush.bf16.msra.mxu0 %v468
        %478 = vmatpush.bf16.msra.mxu0 %v467
        %479 = vmatpush.bf16.msra.mxu0 %v466
        %480 = vmatpush.bf16.msra.mxu0 %v465
        %481 = vmatpush.bf16.msra.mxu0 %v464
        %482 = vmatpush.bf16.msra.mxu0 %v463
        %483 = vmatpush.bf16.msra.mxu0 %v462
        %484 = vmatpush.bf16.msra.mxu0 %v461
        %485 = vmatmul.bf16.gmra.mxu0 %v411
        %v486 = vpop.f32.mrf.mxu0
        %v487 = vadd.f32 %v428, %v486
        %v488 = vpop.f32.mrf.mxu0
        %v489 = vadd.f32 %v428, %v488
        %490 = vdwg.mxu0
        %v491 = vadd.f32 %v405, %v487
        %v492 = vadd.f32 %v407, %v489
        %493 = vadd.xlane.f32.xlu0 %v491
        %v494 = vpop.xlane.xlu0 %493
        %495 = vadd.xlane.f32.xlu0 %v492
        %v496 = vpop.xlane.xlu0 %495
        %v497 = vmul.f32 %v494, 0.03125
        %v498 = vmul.f32 %v496, 0.03125
        %v499 = vmul.f32 %v491, %v491
        %v500 = vmul.f32 %v492, %v492
        %501 = vadd.xlane.f32.xlu0 %v499
        %v502 = vpop.xlane.xlu0 %501
        %503 = vadd.xlane.f32.xlu0 %v500
        %v504 = vpop.xlane.xlu0 %503
        %v505 = vmul.f32 %v502, 0.03125
        %v506 = vmul.f32 %v504, 0.03125
        %v507 = vmul.f32 %v497, %v497
        %v508 = vmul.f32 %v498, %v498
        %v509 = vsub.f32 %v505, %v507
        %v510 = vsub.f32 %v506, %v508
        %v511 = vmax.f32 %v509, 0.0
        %v512 = vmax.f32 %v510, 0.0
        %v513 = vsub.f32 %v491, %v497
        %v514 = vsub.f32 %v492, %v498
        %v515 = vadd.f32 %v511, 1e-05
        %v516 = vadd.f32 %v512, 1e-05
        %v517 = vrsqrt.pop %v515
        %v518 = vmul.f32 %v517, %v515
        %v519 = vmul.f32 %v518, %v517
        %v520 = vmul.f32 0.5, %v519
        %v521 = vsub.f32 1.5, %v520
        %v522 = vmul.f32 %v517, %v521
        %vm523 = vweird.f32 %v515
        %vm524 = vweird.f32 %v517
        %vm525 = vmor %vm523, %vm524
        %v526 = vsel %vm525, %v517, %v522
        %v527 = vrsqrt.pop %v516
        %v528 = vmul.f32 %v527, %v516
        %v529 = vmul.f32 %v528, %v527
        %v530 = vmul.f32 0.5, %v529
        %v531 = vsub.f32 1.5, %v530
        %v532 = vmul.f32 %v527, %v531
        %vm533 = vweird.f32 %v516
        %vm534 = vweird.f32 %v527
        %vm535 = vmor %vm533, %vm534
        %v536 = vsel %vm535, %v527, %v532
        %v537 = vmul.f32 %v513, %v526
        %v538 = vmul.f32 %v514, %v536
        %v539 = vperm.slane %v272, 0
        %v540 = vmul.f32 %v537, %v539
        %v541 = vmul.f32 %v538, %v539
        %v542 = vperm.slane %v273, 0
        %v543 = vadd.f32 %v540, %v542
        %v544 = vadd.f32 %v541, %v542
        %545 = vst [vmem:[%s265] sm:$0xff] %v543
        %546 = vst [vmem:[%s265 + $0x8] sm:$0xff] %v544
        %s547 = sand.u32 %s120, 1
        %s548 = scalar_lea.sflag [#allocation4], %s547
        %s549 = sand.u32 %s120, 1
        %s550 = smul.addr %s549, 16
        %s551 = scalar_lea.vmem [#allocation10], %s550
        // Predicated region
        $region53: #{tpu_custom_call.1} parent=35 // pred_check
          %p552 = pneg %p130
        $region54: #{tpu_custom_call.1} parent=35 // pred_check_branch
          %554 = sbr.rel (%p552) target = $region56
        $region55: #{tpu_custom_call.1} parent=35 // pred_region
          %s555 = smul.u32 2, %s23
          %557 = vsyncadd %s548, 0
          %s558 = smul.addr %s555, 8
          %s559 = scalar_lea.hbm %s4, %s558
          %s560 = sshll.u32 %s551, 4
          %s561 = int_to_ptr.vmem [resolvable:$true] %s560
          %s562 = sshll.u32 %s559, 4
          %s563 = int_to_ptr.hbm [resolvable:$true] %s562
          %568 = dma.vmem_to_hbm [thread:$0]  %s561, 256, %s563, %s548, 128, 128, 8
        $region56: #{tpu_custom_call.1} parent=35 // pred_fallthru
          _
      $region36: #{tpu_custom_call.1} parent=5 // pred_fallthru
        _
      %p569 = scmp.le.s32.totalorder 2, %s18
      // Predicated region
      $region57: #{tpu_custom_call.1} parent=5 // pred_check
        %p570 = pneg %p569
      $region58: #{tpu_custom_call.1} parent=5 // pred_check_branch
        %572 = sbr.rel (%p570) target = $region60
      $region59: #{tpu_custom_call.1} parent=5 // pred_region
        %s573 = ssub.s32 %s18, 2
        // Predicated region
        $region61: #{tpu_custom_call.1} parent=59 // pred_check
          %p574 = pneg %p136
        $region62: #{tpu_custom_call.1} parent=59 // pred_check_branch
          %576 = sbr.rel (%p574) target = $region64
        $region63: #{tpu_custom_call.1} parent=59 // pred_region
          %s577 = sand.u32 %s121, 1
          %s578 = scalar_lea.sflag [#allocation4], %s577
          %s579 = sand.u32 %s121, 1
          %s580 = smul.addr %s579, 16
          %s581 = scalar_lea.vmem [#allocation10], %s580
          %583 = dma.done %s578, 256
        $region64: #{tpu_custom_call.1} parent=59 // pred_fallthru
          _
      $region60: #{tpu_custom_call.1} parent=5 // pred_fallthru
        _
    $region6: #{tpu_custom_call.1} parent=1 // loop_footer
      %s22 = sadd.s32 1, %s18
    $region7: #{tpu_custom_call.1} parent=1 // loop_footer_branch
      %17 = sbr.rel target = $region3
    $region8: #{tpu_custom_call.1} parent=1 // loop_exit
      _
    %584 = vsyncpa [#allocation3], 1
    %s585 = scalar_lea.sflag [#allocation3], 1
    %586 = vsyncpa %s585, 1
    %587 = vsyncpa [#allocation6], 1
    %588 = vsyncpa [#allocation9], 1
    %589 = vsyncpa [#allocation4], 1
    %s590 = scalar_lea.sflag [#allocation4], 1
    %591 = vsyncpa %s590, 1

</llo_original>
